<compile_context>
chip_gen: v7x
topology: tpu7x:2x2x1
jax: 0.10.0
libtpu: 0.0.40
codegen_flags: <defaults>
</compile_context>

<pallas_src>
import functools
import math

import numpy as np
import jax
import jax.numpy as jnp
from jax.experimental import pallas as pl
from jax.experimental.pallas import tpu as pltpu


_VMEM_LIMIT = 48 * 1024 * 1024  # above default scoped limit, < v7x physical 64 MiB


def _round_up(x, m):
    return (x + m - 1) // m * m


def _block_sparsity(adj_np, tm, tk):
    """Per-row-block nonzero adjacency column-block table (host precompute).

    Returns a FLATTENED 1-D int32 cols table (SMEM friendly: 2-D SMEM arrays
    pad to [ceil(R/8)*8, ceil(C/128)*128] words).  Padded entries repeat the
    row's last valid column block so the block index does not change on
    gated-off steps -> no redundant DMA.
    """
    nb_i, nb_k = adj_np.shape[0] // tm, adj_np.shape[1] // tk
    blk = adj_np.reshape(nb_i, tm, nb_k, tk)
    nz = np.abs(blk).sum(axis=(1, 3)) > 0.0            # [nb_i, nb_k]
    counts = nz.sum(axis=1).astype(np.int32)            # [nb_i]
    max_nnz = max(1, int(counts.max()))
    cols = np.zeros((nb_i, max_nnz), np.int32)
    for i in range(nb_i):
        idx = np.nonzero(nz[i])[0].astype(np.int32)
        if idx.size:
            cols[i, : idx.size] = idx
            cols[i, idx.size:] = idx[-1]                 # repeat last valid idx
    return jnp.asarray(cols.reshape(-1)), jnp.asarray(counts), max_nnz


# ----------------------------- Linear kernel ------------------------------ #
def _linear_kernel(x_ref, wt_ref, b_ref, o_ref, *, apply_relu):
    # x: (tm, Cin) bf16, wt: (Cin, Cout) bf16 (pre-transposed), b: (1, Cout) f32
    y = jnp.dot(x_ref[...], wt_ref[...], preferred_element_type=jnp.float32)
    y = y + b_ref[...]
    if apply_relu:
        y = jnp.maximum(y, 0.0)
    o_ref[...] = y.astype(o_ref.dtype)


def linear(x_b, w_t_b, b, *, apply_relu, tm, out_dtype):
    Np, Cin = x_b.shape
    Cout = w_t_b.shape[1]
    b2 = b.reshape(1, Cout).astype(jnp.float32)
    return pl.pallas_call(
        functools.partial(_linear_kernel, apply_relu=apply_relu),
        out_shape=jax.ShapeDtypeStruct((Np, Cout), out_dtype),
        grid_spec=pltpu.PrefetchScalarGridSpec(
            num_scalar_prefetch=0,
            grid=(Np // tm,),
            in_specs=[
                pl.BlockSpec((tm, Cin), lambda i: (i, 0)),
                pl.BlockSpec((Cin, Cout), lambda i: (0, 0)),
                pl.BlockSpec((1, Cout), lambda i: (0, 0)),
            ],
            out_specs=pl.BlockSpec((tm, Cout), lambda i: (i, 0)),
        ),
        compiler_params=pltpu.CompilerParams(
            dimension_semantics=("parallel",),
            vmem_limit_bytes=_VMEM_LIMIT),
    )(x_b, w_t_b, b2)


# --------------------------- Fused GCN2Conv layer -------------------------- #
def _gcn2_kernel(cols_ref, cnt_ref, a_ref, xk_ref, x0_ref, xr_ref, w_ref,
                 o_ref, acc_ref, *, alpha):
    i = pl.program_id(0)
    k = pl.program_id(1)

    # f32 scratch accumulator stays resident across the (arbitrary) k axis;
    # the HBM output itself is bf16 (handed straight to the next layer).
    @pl.when(k == 0)
    def _():
        acc_ref[...] = jnp.zeros_like(acc_ref)

    # Only the pre-computed nonzero adjacency blocks contribute (padded k steps
    # repeat the last valid block index -> no extra DMA, gated off here).
    @pl.when(k < cnt_ref[i])
    def _():
        acc_ref[...] += jnp.dot(a_ref[...], xk_ref[...],
                                preferred_element_type=jnp.float32)

    @pl.when(k == pl.num_programs(1) - 1)
    def _():
        # adj was pre-scaled by (1-alpha) and W_eff = (1-beta) I + beta W on
        # the host, so the GCN2Conv epilogue collapses to two ops + residual.
        s = acc_ref[...] + alpha * x0_ref[...].astype(jnp.float32)
        out = jnp.dot(s.astype(w_ref.dtype), w_ref[...],
                      preferred_element_type=jnp.float32)
        # residual add + relu from Net.forward: x = relu(h + x)
        o_ref[...] = jnp.maximum(out + xr_ref[...].astype(jnp.float32),
                                 0.0).astype(o_ref.dtype)


def gcn2_layer(adj_b, x_b, x0, xres, w_eff, cols, counts, max_nnz, *,
               alpha, tm, tk):
    Np, H = x0.shape
    adj_map = lambda i, k, c, n: (i, c[i * max_nnz + k])
    xk_map = lambda i, k, c, n: (c[i * max_nnz + k], 0)
    row_map = lambda i, k, c, n: (i, 0)
    w_map = lambda i, k, c, n: (0, 0)
    return pl.pallas_call(
        functools.partial(_gcn2_kernel, alpha=float(alpha)),
        out_shape=jax.ShapeDtypeStruct((Np, H), jnp.bfloat16),
        grid_spec=pltpu.PrefetchScalarGridSpec(
            num_scalar_prefetch=2,          # cols (1-D), counts -> SMEM
            grid=(Np // tm, max_nnz),
            in_specs=[
                # adjacency row-tile: only nonzero column blocks are visited
                pl.BlockSpec((tm, tk), adj_map, pipeline_mode=pl.Buffered(3)),
                # x K-tile, gathered by the same column-block table
                pl.BlockSpec((tk, H), xk_map, pipeline_mode=pl.Buffered(3)),
                pl.BlockSpec((tm, H), row_map),   # x_0      (bf16)
                pl.BlockSpec((tm, H), row_map),   # residual (bf16)
                pl.BlockSpec((H, H), w_map),      # W_eff    (bf16)
            ],
            out_specs=pl.BlockSpec((tm, H), row_map),
            scratch_shapes=[pltpu.VMEM((tm, H), jnp.float32)],
        ),
        compiler_params=pltpu.CompilerParams(
            dimension_semantics=("parallel", "arbitrary"),
            vmem_limit_bytes=_VMEM_LIMIT),
    )(cols, counts, adj_b, x_b, x0, xres, w_eff)


# ------------------------------ Full network ------------------------------ #
def net_forward(x, adj, w_in, b_in, w_out, b_out, conv_ws, alpha, betas,
                *, node_tile_m=512, node_tile_k=512):
    # NOTE: this is host-side orchestration -- it needs a CONCRETE adjacency
    # (block-sparsity tables + constant folding happen on the host).  Do not
    # wrap it in jax.jit with a traced `adj`.
    N, Fin = x.shape
    H = w_in.shape[0]
    C = w_out.shape[0]

    tm, tk = node_tile_m, node_tile_k
    assert tm % 128 == 0 and tk % 128 == 0
    N_pad = _round_up(N, math.lcm(tm, tk))

    # pad nodes to the tile grid (padded adj rows/cols are zero; output sliced)
    adj_np = np.zeros((N_pad, N_pad), np.float32)
    adj_np[:N, :N] = np.asarray(adj, dtype=np.float32)

    # host precompute of block-sparsity metadata
    cols, counts, max_nnz = _block_sparsity(adj_np, tm, tk)

    # host constant folding + bf16 MXU operands (f32 accumulation in-kernel):
    #   adj_scaled = (1-alpha) * adj ;  W_eff_l = (1-beta_l) I + beta_l W_l
    adj_b = jnp.asarray((1.0 - alpha) * adj_np, dtype=jnp.bfloat16)
    eye = np.eye(H, dtype=np.float32)
    conv_ws_eff = [
        jnp.asarray((1.0 - b) * eye + b * np.asarray(w, np.float32),
                    dtype=jnp.bfloat16)
        for w, b in zip(conv_ws, betas)
    ]

    # first linear: lane-dense input (pad Fin to a multiple of 128), W pre-transposed
    Fin_pad = _round_up(Fin, 128)
    x_p = jnp.pad(x, ((0, N_pad - N), (0, Fin_pad - Fin))).astype(jnp.bfloat16)
    w_in_t = jnp.zeros((Fin_pad, H), jnp.float32).at[:Fin, :].set(w_in.T)
    w_in_t = w_in_t.astype(jnp.bfloat16)

    # final linear: lane-dense output (pad class dim to a multiple of 128)
    C_pad = _round_up(C, 128)
    w_out_t = jnp.zeros((H, C_pad), jnp.float32).at[:, :C].set(w_out.T)
    w_out_t = w_out_t.astype(jnp.bfloat16)
    b_out_p = jnp.zeros((C_pad,), jnp.float32).at[:C].set(b_out)

    # bf16 handoff between all layers (halves inter-layer HBM traffic)
    h = linear(x_p, w_in_t, b_in, apply_relu=True, tm=tm,
               out_dtype=jnp.bfloat16)
    x0 = h
    cur = h
    for w_eff in conv_ws_eff:
        cur = gcn2_layer(adj_b, cur, x0, cur, w_eff, cols, counts, max_nnz,
                         alpha=alpha, tm=tm, tk=tk)
    out = linear(cur, w_out_t, b_out_p, apply_relu=False, tm=tm,
                 out_dtype=jnp.float32)
    return out[:N, :C]


if __name__ == "__main__":
    # PPI-like sizes: 50 input features, 121 classes; 1500-node banded graph
    # spans a 3x3 grid of 512-wide blocks -> exercises block-skip (corner
    # blocks are all-zero), last-valid-index padding, and node padding.
    N, F_IN, HID, NUM_CLASSES, NUM_LAYERS = 1500, 50, 128, 121, 4
    ALPHA, THETA = 0.1, 0.5

    key = jax.random.PRNGKey(0)
    ks = jax.random.split(key, 8)

    # node features
    x = jax.random.normal(ks[0], (N, F_IN), jnp.float32)

    # synthetic banded symmetric graph + self loops, GCN-normalized
    idx = jnp.arange(N)
    band = jnp.abs(idx[:, None] - idx[None, :]) <= 80
    u = jax.random.uniform(ks[1], (N, N))
    a = (band & ((u + u.T) > 1.7)).astype(jnp.float32)
    a = jnp.clip(a + jnp.eye(N, dtype=jnp.float32), 0.0, 1.0)
    dinv = 1.0 / jnp.sqrt(a.sum(axis=1))
    adj = a * dinv[:, None] * dinv[None, :]

    # deterministic parameters (shapes from Net.__init__)
    w_in = 0.1 * jax.random.normal(ks[2], (HID, F_IN), jnp.float32)
    b_in = 0.1 * jax.random.normal(ks[3], (HID,), jnp.float32)
    w_out = 0.1 * jax.random.normal(ks[4], (NUM_CLASSES, HID), jnp.float32)
    b_out = 0.1 * jax.random.normal(ks[5], (NUM_CLASSES,), jnp.float32)
    conv_ws = [
        0.1 * jax.random.normal(jax.random.fold_in(ks[6], l), (HID, HID),
                                jnp.float32)
        for l in range(NUM_LAYERS)
    ]
    betas = [math.log(THETA / (l + 1) + 1.0) for l in range(NUM_LAYERS)]

    out = net_forward(x, adj, w_in, b_in, w_out, b_out, conv_ws, ALPHA, betas,
                      node_tile_m=512, node_tile_k=512)
    out = jax.block_until_ready(out)
    assert out.shape == (N, NUM_CLASSES)

    # pure-JAX reference mirroring the kernel math exactly
    # (bf16 operands, f32 accumulation, bf16 inter-layer handoff, folded
    #  (1-alpha)*adj and W_eff = (1-beta) I + beta W)
    xb = x.astype(jnp.bfloat16)
    h = jnp.maximum(
        jnp.dot(xb, w_in.T.astype(jnp.bfloat16),
                preferred_element_type=jnp.float32) + b_in, 0.0)
    cur = h.astype(jnp.bfloat16)
    x0 = cur
    adj_s = ((1.0 - ALPHA) * adj).astype(jnp.bfloat16)
    eye = jnp.eye(HID, dtype=jnp.float32)
    for l in range(NUM_LAYERS):
        agg = jnp.dot(adj_s, cur, preferred_element_type=jnp.float32)
        s = agg + ALPHA * x0.astype(jnp.float32)
        w_eff = ((1.0 - betas[l]) * eye
                 + betas[l] * conv_ws[l]).astype(jnp.bfloat16)
        o = jnp.dot(s.astype(jnp.bfloat16), w_eff,
                    preferred_element_type=jnp.float32)
        cur = jnp.maximum(o + cur.astype(jnp.float32), 0.0).astype(jnp.bfloat16)
    ref = jnp.dot(cur, w_out.T.astype(jnp.bfloat16),
                  preferred_element_type=jnp.float32) + b_out

    err = float(jnp.max(jnp.abs(out - ref)))
    assert bool(jnp.allclose(out, ref, atol=2e-2, rtol=2e-2)), err

    print("KERNEL_OK")
</pallas_src>

<mosaic_0001>
module attributes {stable_mosaic.version = 11 : i64} {
  func.func @_linear_kernel(%arg0: i32, %arg1: memref<512x128xbf16, #tpu.memory_space<vmem>>, %arg2: memref<128x128xbf16, #tpu.memory_space<vmem>>, %arg3: memref<1x128xf32, #tpu.memory_space<vmem>>, %arg4: memref<512x128xbf16, #tpu.memory_space<vmem>>) attributes {dimension_semantics = [#tpu.dimension_semantics<parallel>], iteration_bounds = array<i64: 3>, scalar_prefetch = 0 : i64, scratch_operands = 0 : i64, tpu.core_type = #tpu.core_type<tc>, window_params = [{transform_indices = @transform_0, window_bounds = array<i64: 512, 128>}, {pipeline_mode = #tpu.pipeline_mode<synchronous>, transform_indices = @transform_1, window_bounds = array<i64: 128, 128>}, {pipeline_mode = #tpu.pipeline_mode<synchronous>, transform_indices = @transform_2, window_bounds = array<i64: 1, 128>}, {transform_indices = @transform_3, window_bounds = array<i64: 512, 128>}]} {
    %c0 = arith.constant 0 : index
    %c0_0 = arith.constant 0 : index
    %0 = vector.load %arg1[%c0, %c0_0] : memref<512x128xbf16, #tpu.memory_space<vmem>>, vector<512x128xbf16>
    %c0_1 = arith.constant 0 : index
    %c0_2 = arith.constant 0 : index
    %1 = vector.load %arg2[%c0_1, %c0_2] : memref<128x128xbf16, #tpu.memory_space<vmem>>, vector<128x128xbf16>
    %cst = arith.constant dense<0.000000e+00> : vector<512x128xf32>
    %2 = tpu.matmul %0, %1, %cst {dimension_numbers = #tpu.dot_dimension_numbers<[1], [0], [0], [1], [0, 0, 1, 1], [], []>} : vector<512x128xbf16>, vector<128x128xbf16>, vector<512x128xf32> -> vector<512x128xf32>
    %c0_3 = arith.constant 0 : index
    %c0_4 = arith.constant 0 : index
    %3 = vector.load %arg3[%c0_3, %c0_4] : memref<1x128xf32, #tpu.memory_space<vmem>>, vector<1x128xf32>
    %4 = vector.broadcast %3 : vector<1x128xf32> to vector<512x128xf32>
    %5 = arith.addf %2, %4 : vector<512x128xf32>
    %cst_5 = arith.constant 0.000000e+00 : f32
    %6 = vector.broadcast %cst_5 : f32 to vector<512x128xf32>
    %7 = arith.maximumf %5, %6 : vector<512x128xf32>
    %8 = arith.truncf %7 : vector<512x128xf32> to vector<512x128xbf16>
    %c0_6 = arith.constant 0 : index
    %c0_7 = arith.constant 0 : index
    %9 = vector.load %arg4[%c0_6, %c0_7] : memref<512x128xbf16, #tpu.memory_space<vmem>>, vector<512x128xbf16>
    tpu.vector_store %arg4[%c0_6, %c0_7], %8 {strides = array<i32>} : memref<512x128xbf16, #tpu.memory_space<vmem>>, vector<512x128xbf16>,
    return
  }
  func.func @transform_0(%arg0: i32) -> (i32, i32) {
    %c0_i32 = arith.constant 0 : i32
    %c0_i32_0 = arith.constant 0 : i32
    return %arg0, %c0_i32 : i32, i32
  }
  func.func @transform_1(%arg0: i32) -> (i32, i32) {
    %c0_i32 = arith.constant 0 : i32
    %c0_i32_0 = arith.constant 0 : i32
    %c0_i32_1 = arith.constant 0 : i32
    return %c0_i32, %c0_i32_0 : i32, i32
  }
  func.func @transform_2(%arg0: i32) -> (i32, i32) {
    %c0_i32 = arith.constant 0 : i32
    %c0_i32_0 = arith.constant 0 : i32
    %c0_i32_1 = arith.constant 0 : i32
    return %c0_i32, %c0_i32_0 : i32, i32
  }
  func.func @transform_3(%arg0: i32) -> (i32, i32) {
    %c0_i32 = arith.constant 0 : i32
    %c0_i32_0 = arith.constant 0 : i32
    return %arg0, %c0_i32 : i32, i32
  }
}

</mosaic_0001>

<llo_original>
// kernel: tpu_custom_call.1
$region0: #{tpu_custom_call.1}
  #allocation0 [shape = 'u32[]', space=smem, size = 0x4, offset = 0x4, fixed_abs, tag = 'smem constant byte address 0x4 - core index']
  #allocation1 [shape = 'u32[144,128]{1,0:T(1,128)}', space=vmem, size = 0x12000, scoped, tag = 'internal scratch']
  %s0 = inlined_call_operand.hbm [shape: bf16[1536,128], index: 0, kind: input, shape index: {}]
  %s1 = inlined_call_operand.hbm [shape: bf16[128,128], index: 1, kind: input, shape index: {}]
  %s2 = inlined_call_operand.vmem [shape: f32[1,128], index: 2, kind: input, shape index: {}]
  %s3 = inlined_call_operand.hbm [shape: bf16[1536,128], index: 3, kind: output, shape index: {}]
  %s4 = sld [smem:[#allocation0]]
  $region53: #{tpu_custom_call.1} parent=0
    _
  %s6 = ssub.s32 1, %s4
  %s7 = scalar_select 0, %s6, %s4
  $region1: #{tpu_custom_call.1} parent=0
    #allocation2 [shape = 'u8[262144]{0}', space=vmem, size = 0x40000, scoped, tag = 'input window, operand 0']
    #allocation3 [shape = 's32[2]{0}', space=sflag, size = 0x8, scoped, tag = 'scoped memory for tpu_custom_call.1']
    #allocation4 [shape = 's32[2]{0}', space=sflag, size = 0x8, scoped, tag = 'scoped memory for tpu_custom_call.1']
    #allocation5 [shape = 'u8[32768]{0}', space=vmem, size = 0x8000, scoped, tag = 'input window, operand 1, single buffered']
    #allocation6 [shape = 's32[1]{0}', space=sflag, size = 0x4, scoped, tag = 'scoped memory for tpu_custom_call.1']
    #allocation7 [shape = 'u8[262144]{0}', space=vmem, size = 0x40000, scoped, tag = 'output window, operand 0']
    %8 = vsyncpa [#allocation3], 0
    %s9 = scalar_lea.sflag [#allocation3], 1
    %10 = vsyncpa %s9, 0
    %11 = vsyncpa [#allocation6], 0
    %12 = vsyncpa [#allocation4], 0
    %s13 = scalar_lea.sflag [#allocation4], 1
    %14 = vsyncpa %s13, 0
    loop: start=0, step=1, limit=5
    $region2: #{tpu_custom_call.1} parent=1 // loop_pre_header
      _
    $region3: #{tpu_custom_call.1} parent=1 // loop_header
      %s16 = sphi 0, %s20
      %p17 = scmp.ge.s32.totalorder %s16, 5
      %s26 = sphi 0, %s28
      %s29 = sphi 0, %s26
      %s30 = sphi 0, %s29
      %s46 = sphi 0, %s30
      %s50 = sphi 0, %s50
      %s52 = sphi 0, %s50
      %s53 = sphi 0, %s52
      %s67 = sphi 0, %s53
      %s71 = sphi 0, %s71
      %s73 = sphi 0, %s71
      %s74 = sphi 0, %s73
      %s88 = sphi 0, %s74
      %s94 = sphi 0, %s96
      %s97 = sphi 0, %s94
      %s98 = sphi 0, %s97
      %s114 = sphi 0, %s98
    $region4: #{tpu_custom_call.1} parent=1 // loop_header_branch
      %19 = sbr.rel (%p17) target = $region8
    $region5: #{tpu_custom_call.1} parent=1 // loop_body
      %s21 = ssub.s32 %s16, 1
      %s22 = ssub.s32 %s16, 2
      %s23 = sadd.s32 %s16, 1
      %s24 = ssub.s32 %s16, %s23
      %p25 = scmp.eq.s32.totalorder %s24, 0
      %s27 = sadd.s32 %s26, 1
      %s28 = scalar_select %p25, %s26, %s27
      %p31 = pneg %p25
      %p32 = scmp.eq.s32.totalorder %s16, 2
      %p33 = por %p31, %p32
      %p34 = scmp.ne.s32.totalorder %s26, %s29
      %p35 = scmp.eq.s32.totalorder %s16, 0
      %p36 = por %p34, %p35
      %p37 = scmp.ne.s32.totalorder %s26, %s29
      %p38 = scmp.eq.s32.totalorder %s21, 2
      %p39 = por %p37, %p38
      %p40 = scmp.ne.s32.totalorder %s29, %s30
      %p41 = scmp.eq.s32.totalorder %s21, 0
      %p42 = por %p40, %p41
      %p43 = scmp.ne.s32.totalorder %s29, %s30
      %p44 = scmp.eq.s32.totalorder %s22, 2
      %p45 = por %p43, %p44
      %p47 = scmp.ne.s32.totalorder %s30, %s46
      %p48 = scmp.eq.s32.totalorder %s22, 0
      %p49 = por %p47, %p48
      %s51 = sadd.s32 %s50, 1
      %p54 = scmp.eq.s32.totalorder %s16, 2
      %p55 = scmp.ne.s32.totalorder %s50, %s52
      %p56 = scmp.eq.s32.totalorder %s16, 0
      %p57 = por %p55, %p56
      %p58 = scmp.ne.s32.totalorder %s50, %s52
      %p59 = scmp.eq.s32.totalorder %s21, 2
      %p60 = por %p58, %p59
      %p61 = scmp.ne.s32.totalorder %s52, %s53
      %p62 = scmp.eq.s32.totalorder %s21, 0
      %p63 = por %p61, %p62
      %p64 = scmp.ne.s32.totalorder %s52, %s53
      %p65 = scmp.eq.s32.totalorder %s22, 2
      %p66 = por %p64, %p65
      %p68 = scmp.ne.s32.totalorder %s53, %s67
      %p69 = scmp.eq.s32.totalorder %s22, 0
      %p70 = por %p68, %p69
      %s72 = sadd.s32 %s71, 1
      %p75 = scmp.eq.s32.totalorder %s16, 2
      %p76 = scmp.ne.s32.totalorder %s71, %s73
      %p77 = scmp.eq.s32.totalorder %s16, 0
      %p78 = por %p76, %p77
      %p79 = scmp.ne.s32.totalorder %s71, %s73
      %p80 = scmp.eq.s32.totalorder %s21, 2
      %p81 = por %p79, %p80
      %p82 = scmp.ne.s32.totalorder %s73, %s74
      %p83 = scmp.eq.s32.totalorder %s21, 0
      %p84 = por %p82, %p83
      %p85 = scmp.ne.s32.totalorder %s73, %s74
      %p86 = scmp.eq.s32.totalorder %s22, 2
      %p87 = por %p85, %p86
      %p89 = scmp.ne.s32.totalorder %s74, %s88
      %p90 = scmp.eq.s32.totalorder %s22, 0
      %p91 = por %p89, %p90
      %s92 = ssub.s32 %s16, %s23
      %p93 = scmp.eq.s32.totalorder %s92, 0
      %s95 = sadd.s32 %s94, 1
      %s96 = scalar_select %p93, %s94, %s95
      %p99 = pneg %p93
      %p100 = scmp.eq.s32.totalorder %s16, 2
      %p101 = por %p99, %p100
      %p102 = scmp.ne.s32.totalorder %s94, %s97
      %p103 = scmp.eq.s32.totalorder %s16, 0
      %p104 = por %p102, %p103
      %p105 = scmp.ne.s32.totalorder %s94, %s97
      %p106 = scmp.eq.s32.totalorder %s21, 2
      %p107 = por %p105, %p106
      %p108 = scmp.ne.s32.totalorder %s97, %s98
      %p109 = scmp.eq.s32.totalorder %s21, 0
      %p110 = por %p108, %p109
      %p111 = scmp.ne.s32.totalorder %s97, %s98
      %p112 = scmp.eq.s32.totalorder %s22, 2
      %p113 = por %p111, %p112
      %p115 = scmp.ne.s32.totalorder %s98, %s114
      %p116 = scmp.eq.s32.totalorder %s22, 0
      %p117 = por %p115, %p116
      %p118 = scmp.le.s32.totalorder 1, %s16
      %p119 = scmp.lt.s32.totalorder %s16, 4
      %p120 = pnand %p118, %p119
      %p121 = pneg %p120
      // Predicated region
      $region9: #{tpu_custom_call.1} parent=5 // pred_check
        _
      $region10: #{tpu_custom_call.1} parent=5 // pred_check_branch
        %123 = sbr.rel (%p120) target = $region12
      $region11: #{tpu_custom_call.1} parent=5 // pred_region
        %s124 = ssub.s32 %s16, 1
        // Predicated region
        $region13: #{tpu_custom_call.1} parent=11 // pred_check
          %p125 = pneg %p63
        $region14: #{tpu_custom_call.1} parent=11 // pred_check_branch
          %127 = sbr.rel (%p125) target = $region16
        $region15: #{tpu_custom_call.1} parent=11 // pred_region
          %s129 = ssub.s32 1024, 1024
          %130 = vsyncadd [#allocation6], %s129
          %s131 = sshll.u32 [#allocation5], 4
          %s132 = int_to_ptr.vmem [resolvable:$true] %s131
          %137 = dma.hbm_to_vmem [thread:$0]  %s1, 1024, %s132, [#allocation6], 64, 64, 4
        $region16: #{tpu_custom_call.1} parent=11 // pred_fallthru
          _
        // Predicated region
        $region17: #{tpu_custom_call.1} parent=11 // pred_check
          %p138 = pneg %p84
        $region18: #{tpu_custom_call.1} parent=11 // pred_check_branch
          %140 = sbr.rel (%p138) target = $region20
        $region19: #{tpu_custom_call.1} parent=11 // pred_region
          _
        $region20: #{tpu_custom_call.1} parent=11 // pred_fallthru
          _
      $region12: #{tpu_custom_call.1} parent=5 // pred_fallthru
        _
      %p141 = scmp.lt.s32.totalorder %s16, 3
      // Predicated region
      $region21: #{tpu_custom_call.1} parent=5 // pred_check
        %p142 = pneg %p141
      $region22: #{tpu_custom_call.1} parent=5 // pred_check_branch
        %144 = sbr.rel (%p142) target = $region24
      $region23: #{tpu_custom_call.1} parent=5 // pred_region
        // Predicated region
        $region25: #{tpu_custom_call.1} parent=23 // pred_check
          %p145 = pneg %p36
        $region26: #{tpu_custom_call.1} parent=23 // pred_check_branch
          %147 = sbr.rel (%p145) target = $region28
        $region27: #{tpu_custom_call.1} parent=23 // pred_region
          %s148 = sand.u32 %s26, 1
          %s149 = scalar_lea.sflag [#allocation3], %s148
          %s150 = sand.u32 %s26, 1
          %s151 = smul.addr %s150, 256
          %s152 = scalar_lea.vmem [#allocation2], %s151
          %s153 = smul.u32 64, %s16
          %s155 = ssub.s32 4096, 4096
          %156 = vsyncadd %s149, %s155
          %s157 = smul.addr %s153, 64
          %s158 = scalar_lea.hbm %s0, %s157
          %s159 = sshll.u32 %s152, 4
          %s160 = int_to_ptr.vmem [resolvable:$true] %s159
          %165 = dma.hbm_to_vmem [thread:$0]  %s158, 4096, %s160, %s149, 64, 64, 4
        $region28: #{tpu_custom_call.1} parent=23 // pred_fallthru
          _
      $region24: #{tpu_custom_call.1} parent=5 // pred_fallthru
        _
      %p166 = scmp.le.s32.totalorder 1, %s16
      %p167 = scmp.lt.s32.totalorder %s16, 4
      %p168 = pnand %p166, %p167
      %p169 = pneg %p168
      // Predicated region
      $region29: #{tpu_custom_call.1} parent=5 // pred_check
        _
      $region30: #{tpu_custom_call.1} parent=5 // pred_check_branch
        %171 = sbr.rel (%p168) target = $region32
      $region31: #{tpu_custom_call.1} parent=5 // pred_region
        %s172 = ssub.s32 %s16, 1
        %s173 = sand.u32 %s29, 1
        %s174 = scalar_lea.sflag [#allocation3], %s173
        %s175 = sand.u32 %s29, 1
        %s176 = smul.addr %s175, 256
        %s177 = scalar_lea.vmem [#allocation2], %s176
        // Predicated region
        $region33: #{tpu_custom_call.1} parent=31 // pred_check
          %p178 = pneg %p42
        $region34: #{tpu_custom_call.1} parent=31 // pred_check_branch
          %180 = sbr.rel (%p178) target = $region36
        $region35: #{tpu_custom_call.1} parent=31 // pred_region
          %181 = dma.done %s174, 4096
        $region36: #{tpu_custom_call.1} parent=31 // pred_fallthru
          _
        // Predicated region
        $region37: #{tpu_custom_call.1} parent=31 // pred_check
          %p182 = pneg %p63
        $region38: #{tpu_custom_call.1} parent=31 // pred_check_branch
          %184 = sbr.rel (%p182) target = $region40
        $region39: #{tpu_custom_call.1} parent=31 // pred_region
          %185 = dma.done [#allocation6], 1024
        $region40: #{tpu_custom_call.1} parent=31 // pred_fallthru
          _
        %s186 = sand.u32 %s29, 1
        %s187 = scalar_lea.sflag [#allocation3], %s186
        %s188 = sand.u32 %s29, 1
        %s189 = smul.addr %s188, 256
        %s190 = scalar_lea.vmem [#allocation2], %s189
        %p191 = pneg %p42
        %p192 = pneg %p39
        %p193 = pneg %p63
        %p194 = pneg %p60
        %p195 = pneg %p84
        %p196 = pneg %p81
        %p197 = pneg %p110
        %p198 = pneg %p107
        %s199 = sand.u32 %s97, 1
        %s200 = scalar_lea.sflag [#allocation4], %s199
        %s201 = sand.u32 %s97, 1
        %s202 = smul.addr %s201, 256
        %s203 = scalar_lea.vmem [#allocation7], %s202
        %s204 = smul.u32 64, %s21
        %s205 = smul.u32 64, %s21
        %v207 = vld [vmem:[%s177] sm:$0xf]
        %v208 = vld [vmem:[%s177 + $0x4] sm:$0xf]
        %v209 = vld [vmem:[%s177 + $0x8] sm:$0xf]
        %v210 = vld [vmem:[%s177 + $0xc] sm:$0xf]
        %v211 = vld [vmem:[%s177 + $0x10] sm:$0xf]
        %v212 = vld [vmem:[%s177 + $0x14] sm:$0xf]
        %v213 = vld [vmem:[%s177 + $0x18] sm:$0xf]
        %v214 = vld [vmem:[%s177 + $0x1c] sm:$0xf]
        %v215 = vld [vmem:[%s177 + $0x20] sm:$0xf]
        %v216 = vld [vmem:[%s177 + $0x24] sm:$0xf]
        %v217 = vld [vmem:[%s177 + $0x28] sm:$0xf]
        %v218 = vld [vmem:[%s177 + $0x2c] sm:$0xf]
        %v219 = vld [vmem:[%s177 + $0x30] sm:$0xf]
        %v220 = vld [vmem:[%s177 + $0x34] sm:$0xf]
        %v221 = vld [vmem:[%s177 + $0x38] sm:$0xf]
        %v222 = vld [vmem:[%s177 + $0x3c] sm:$0xf]
        %v223 = vld [vmem:[%s177 + $0x40] sm:$0xf]
        %v224 = vld [vmem:[%s177 + $0x44] sm:$0xf]
        %v225 = vld [vmem:[%s177 + $0x48] sm:$0xf]
        %v226 = vld [vmem:[%s177 + $0x4c] sm:$0xf]
        %v227 = vld [vmem:[%s177 + $0x50] sm:$0xf]
        %v228 = vld [vmem:[%s177 + $0x54] sm:$0xf]
        %v229 = vld [vmem:[%s177 + $0x58] sm:$0xf]
        %v230 = vld [vmem:[%s177 + $0x5c] sm:$0xf]
        %v231 = vld [vmem:[%s177 + $0x60] sm:$0xf]
        %v232 = vld [vmem:[%s177 + $0x64] sm:$0xf]
        %v233 = vld [vmem:[%s177 + $0x68] sm:$0xf]
        %v234 = vld [vmem:[%s177 + $0x6c] sm:$0xf]
        %v235 = vld [vmem:[%s177 + $0x70] sm:$0xf]
        %v236 = vld [vmem:[%s177 + $0x74] sm:$0xf]
        %v237 = vld [vmem:[%s177 + $0x78] sm:$0xf]
        %v238 = vld [vmem:[%s177 + $0x7c] sm:$0xf]
        %v239 = vld [vmem:[%s177 + $0x80] sm:$0xf]
        %v240 = vld [vmem:[%s177 + $0x84] sm:$0xf]
        %v241 = vld [vmem:[%s177 + $0x88] sm:$0xf]
        %v242 = vld [vmem:[%s177 + $0x8c] sm:$0xf]
        %v243 = vld [vmem:[%s177 + $0x90] sm:$0xf]
        %v244 = vld [vmem:[%s177 + $0x94] sm:$0xf]
        %v245 = vld [vmem:[%s177 + $0x98] sm:$0xf]
        %v246 = vld [vmem:[%s177 + $0x9c] sm:$0xf]
        %v247 = vld [vmem:[%s177 + $0xa0] sm:$0xf]
        %v248 = vld [vmem:[%s177 + $0xa4] sm:$0xf]
        %v249 = vld [vmem:[%s177 + $0xa8] sm:$0xf]
        %v250 = vld [vmem:[%s177 + $0xac] sm:$0xf]
        %v251 = vld [vmem:[%s177 + $0xb0] sm:$0xf]
        %v252 = vld [vmem:[%s177 + $0xb4] sm:$0xf]
        %v253 = vld [vmem:[%s177 + $0xb8] sm:$0xf]
        %v254 = vld [vmem:[%s177 + $0xbc] sm:$0xf]
        %v255 = vld [vmem:[%s177 + $0xc0] sm:$0xf]
        %v256 = vld [vmem:[%s177 + $0xc4] sm:$0xf]
        %v257 = vld [vmem:[%s177 + $0xc8] sm:$0xf]
        %v258 = vld [vmem:[%s177 + $0xcc] sm:$0xf]
        %v259 = vld [vmem:[%s177 + $0xd0] sm:$0xf]
        %v260 = vld [vmem:[%s177 + $0xd4] sm:$0xf]
        %v261 = vld [vmem:[%s177 + $0xd8] sm:$0xf]
        %v262 = vld [vmem:[%s177 + $0xdc] sm:$0xf]
        %v263 = vld [vmem:[%s177 + $0xe0] sm:$0xf]
        %v264 = vld [vmem:[%s177 + $0xe4] sm:$0xf]
        %v265 = vld [vmem:[%s177 + $0xe8] sm:$0xf]
        %v266 = vld [vmem:[%s177 + $0xec] sm:$0xf]
        %v267 = vld [vmem:[%s177 + $0xf0] sm:$0xf]
        %v268 = vld [vmem:[%s177 + $0xf4] sm:$0xf]
        %v269 = vld [vmem:[%s177 + $0xf8] sm:$0xf]
        %v270 = vld [vmem:[%s177 + $0xfc] sm:$0xf]
        %v271 = vld [vmem:[#allocation5] sm:$0xf]
        %v272 = vld [vmem:[#allocation5 + $0x4] sm:$0xf]
        %v273 = vld [vmem:[#allocation5 + $0x8] sm:$0xf]
        %v274 = vld [vmem:[#allocation5 + $0xc] sm:$0xf]
        %v275 = vld [vmem:[#allocation5 + $0x10] sm:$0xf]
        %v276 = vld [vmem:[#allocation5 + $0x14] sm:$0xf]
        %v277 = vld [vmem:[#allocation5 + $0x18] sm:$0xf]
        %v278 = vld [vmem:[#allocation5 + $0x1c] sm:$0xf]
        %v279 = vld [vmem:[#allocation5 + $0x20] sm:$0xf]
        %v280 = vld [vmem:[#allocation5 + $0x24] sm:$0xf]
        %v281 = vld [vmem:[#allocation5 + $0x28] sm:$0xf]
        %v282 = vld [vmem:[#allocation5 + $0x2c] sm:$0xf]
        %v283 = vld [vmem:[#allocation5 + $0x30] sm:$0xf]
        %v284 = vld [vmem:[#allocation5 + $0x34] sm:$0xf]
        %v285 = vld [vmem:[#allocation5 + $0x38] sm:$0xf]
        %v286 = vld [vmem:[#allocation5 + $0x3c] sm:$0xf]
        %v287 = vld [vmem:[%s2] sm:$0x1]
        %v289 = vlaneseq
        %v290 = vshrl.u32 %v289, 7
        %v291 = vsub.s32 0, %v290
        %v292 = vrot.slane %v287, %v291
        %v358 = vunpack.c.l.b16 %v207
        %v359 = vunpack.c.l.b16 %v208
        %v360 = vunpack.c.l.b16 %v209
        %v361 = vunpack.c.l.b16 %v210
        %v362 = vunpack.c.l.b16 %v211
        %v363 = vunpack.c.l.b16 %v212
        %v364 = vunpack.c.l.b16 %v213
        %v365 = vunpack.c.l.b16 %v214
        %v366 = vunpack.c.l.b16 %v215
        %v367 = vunpack.c.l.b16 %v216
        %v368 = vunpack.c.l.b16 %v217
        %v369 = vunpack.c.l.b16 %v218
        %v370 = vunpack.c.l.b16 %v219
        %v371 = vunpack.c.l.b16 %v220
        %v372 = vunpack.c.l.b16 %v221
        %v373 = vunpack.c.l.b16 %v222
        %v374 = vunpack.c.l.b16 %v223
        %v375 = vunpack.c.l.b16 %v224
        %v376 = vunpack.c.l.b16 %v225
        %v377 = vunpack.c.l.b16 %v226
        %v378 = vunpack.c.l.b16 %v227
        %v379 = vunpack.c.l.b16 %v228
        %v380 = vunpack.c.l.b16 %v229
        %v381 = vunpack.c.l.b16 %v230
        %v382 = vunpack.c.l.b16 %v231
        %v383 = vunpack.c.l.b16 %v232
        %v384 = vunpack.c.l.b16 %v233
        %v385 = vunpack.c.l.b16 %v234
        %v386 = vunpack.c.l.b16 %v235
        %v387 = vunpack.c.l.b16 %v236
        %v388 = vunpack.c.l.b16 %v237
        %v389 = vunpack.c.l.b16 %v238
        %v390 = vunpack.c.l.b16 %v239
        %v391 = vunpack.c.l.b16 %v240
        %v392 = vunpack.c.l.b16 %v241
        %v393 = vunpack.c.l.b16 %v242
        %v394 = vunpack.c.l.b16 %v243
        %v395 = vunpack.c.l.b16 %v244
        %v396 = vunpack.c.l.b16 %v245
        %v397 = vunpack.c.l.b16 %v246
        %v398 = vunpack.c.l.b16 %v247
        %v399 = vunpack.c.l.b16 %v248
        %v400 = vunpack.c.l.b16 %v249
        %v401 = vunpack.c.l.b16 %v250
        %v402 = vunpack.c.l.b16 %v251
        %v403 = vunpack.c.l.b16 %v252
        %v404 = vunpack.c.l.b16 %v253
        %v405 = vunpack.c.l.b16 %v254
        %v406 = vunpack.c.l.b16 %v255
        %v407 = vunpack.c.l.b16 %v256
        %v408 = vunpack.c.l.b16 %v257
        %v409 = vunpack.c.l.b16 %v258
        %v410 = vunpack.c.l.b16 %v259
        %v411 = vunpack.c.l.b16 %v260
        %v412 = vunpack.c.l.b16 %v261
        %v413 = vunpack.c.l.b16 %v262
        %v414 = vunpack.c.l.b16 %v263
        %v415 = vunpack.c.l.b16 %v264
        %v416 = vunpack.c.l.b16 %v265
        %v417 = vunpack.c.l.b16 %v266
        %v418 = vunpack.c.l.b16 %v267
        %v419 = vunpack.c.l.b16 %v268
        %v420 = vunpack.c.l.b16 %v269
        %v421 = vunpack.c.l.b16 %v270
        %v422 = vpack.c.b16 %v359, %v358
        %v423 = vpack.c.b16 %v361, %v360
        %v424 = vpack.c.b16 %v363, %v362
        %v425 = vpack.c.b16 %v365, %v364
        %v426 = vpack.c.b16 %v367, %v366
        %v427 = vpack.c.b16 %v369, %v368
        %v428 = vpack.c.b16 %v371, %v370
        %v429 = vpack.c.b16 %v373, %v372
        %v430 = vpack.c.b16 %v375, %v374
        %v431 = vpack.c.b16 %v377, %v376
        %v432 = vpack.c.b16 %v379, %v378
        %v433 = vpack.c.b16 %v381, %v380
        %v434 = vpack.c.b16 %v383, %v382
        %v435 = vpack.c.b16 %v385, %v384
        %v436 = vpack.c.b16 %v387, %v386
        %v437 = vpack.c.b16 %v389, %v388
        %v438 = vpack.c.b16 %v391, %v390
        %v439 = vpack.c.b16 %v393, %v392
        %v440 = vpack.c.b16 %v395, %v394
        %v441 = vpack.c.b16 %v397, %v396
        %v442 = vpack.c.b16 %v399, %v398
        %v443 = vpack.c.b16 %v401, %v400
        %v444 = vpack.c.b16 %v403, %v402
        %v445 = vpack.c.b16 %v405, %v404
        %v446 = vpack.c.b16 %v407, %v406
        %v447 = vpack.c.b16 %v409, %v408
        %v448 = vpack.c.b16 %v411, %v410
        %v449 = vpack.c.b16 %v413, %v412
        %v450 = vpack.c.b16 %v415, %v414
        %v451 = vpack.c.b16 %v417, %v416
        %v452 = vpack.c.b16 %v419, %v418
        %v453 = vpack.c.b16 %v421, %v420
        %v502 = vunpack.c.l.b16 %v271
        %v503 = vunpack.c.l.b16 %v272
        %v504 = vunpack.c.l.b16 %v273
        %v505 = vunpack.c.l.b16 %v274
        %v506 = vunpack.c.l.b16 %v275
        %v507 = vunpack.c.l.b16 %v276
        %v508 = vunpack.c.l.b16 %v277
        %v509 = vunpack.c.l.b16 %v278
        %v510 = vunpack.c.l.b16 %v279
        %v511 = vunpack.c.l.b16 %v280
        %v512 = vunpack.c.l.b16 %v281
        %v513 = vunpack.c.l.b16 %v282
        %v514 = vunpack.c.l.b16 %v283
        %v515 = vunpack.c.l.b16 %v284
        %v516 = vunpack.c.l.b16 %v285
        %v517 = vunpack.c.l.b16 %v286
        %v518 = vpack.c.b16 %v503, %v502
        %v519 = vpack.c.b16 %v505, %v504
        %v520 = vpack.c.b16 %v507, %v506
        %v521 = vpack.c.b16 %v509, %v508
        %v522 = vpack.c.b16 %v511, %v510
        %v523 = vpack.c.b16 %v513, %v512
        %v524 = vpack.c.b16 %v515, %v514
        %v525 = vpack.c.b16 %v517, %v516
        %534 = vmatprep.subr.bf16.mxu0 0
        %535 = vmatpush1.bf16.msra.mxu0 %v518
        %536 = vmatprep.subr.bf16.mxu0 0
        %537 = vmatpush1.bf16.msra.mxu0 %v519
        %538 = vmatprep.subr.bf16.mxu0 0
        %539 = vmatpush1.bf16.msra.mxu0 %v520
        %540 = vmatprep.subr.bf16.mxu0 0
        %541 = vmatpush1.bf16.msra.mxu0 %v521
        %542 = vmatprep.subr.bf16.mxu0 0
        %543 = vmatpush1.bf16.msra.mxu0 %v522
        %544 = vmatprep.subr.bf16.mxu0 0
        %545 = vmatpush1.bf16.msra.mxu0 %v523
        %546 = vmatprep.subr.bf16.mxu0 0
        %547 = vmatpush1.bf16.msra.mxu0 %v524
        %548 = vmatprep.subr.bf16.mxu0 0
        %549 = vmatpush1.bf16.msra.mxu0 %v525
        %550 = vmatprep.subr.bf16.mxu0 0
        %551 = vmatpush1.bf16.msra.mxu0 0
        %552 = vmatprep.subr.bf16.mxu0 0
        %553 = vmatpush1.bf16.msra.mxu0 0
        %554 = vmatprep.subr.bf16.mxu0 0
        %555 = vmatpush1.bf16.msra.mxu0 0
        %556 = vmatprep.subr.bf16.mxu0 0
        %557 = vmatpush1.bf16.msra.mxu0 0
        %558 = vmatprep.subr.bf16.mxu0 0
        %559 = vmatpush1.bf16.msra.mxu0 0
        %560 = vmatprep.subr.bf16.mxu0 0
        %561 = vmatpush1.bf16.msra.mxu0 0
        %562 = vmatprep.subr.bf16.mxu0 0
        %563 = vmatpush1.bf16.msra.mxu0 0
        %564 = vmatprep.subr.bf16.mxu0 0
        %565 = vmatpush1.bf16.msra.mxu0 0
        %566 = vmatprep.mubr.bf16.mxu0 0
        %567 = vmatmul.mubr.bf16.gmra.mrb[0].mxu0 %v422
        %v568 = vpop.f32.mrb[0].mxu0
        %v569 = vadd.f32 %v292, %v568
        %v570 = vpop.f32.mrb[0].mxu0
        %v571 = vpop.f32.mrb[0].mxu0
        %v572 = vadd.f32 %v292, %v571
        %v573 = vpop.f32.mrb[0].mxu0
        %574 = vmatprep.mubr.bf16.mxu0 0
        %575 = vmatmul.mubr.bf16.gmra.mrb[0].mxu0 %v423
        %v576 = vpop.f32.mrb[0].mxu0
        %v577 = vadd.f32 %v292, %v576
        %v578 = vpop.f32.mrb[0].mxu0
        %v579 = vpop.f32.mrb[0].mxu0
        %v580 = vadd.f32 %v292, %v579
        %v581 = vpop.f32.mrb[0].mxu0
        %582 = vmatprep.mubr.bf16.mxu0 0
        %583 = vmatmul.mubr.bf16.gmra.mrb[0].mxu0 %v424
        %v584 = vpop.f32.mrb[0].mxu0
        %v585 = vadd.f32 %v292, %v584
        %v586 = vpop.f32.mrb[0].mxu0
        %v587 = vpop.f32.mrb[0].mxu0
        %v588 = vadd.f32 %v292, %v587
        %v589 = vpop.f32.mrb[0].mxu0
        %590 = vmatprep.mubr.bf16.mxu0 0
        %591 = vmatmul.mubr.bf16.gmra.mrb[0].mxu0 %v425
        %v592 = vpop.f32.mrb[0].mxu0
        %v593 = vadd.f32 %v292, %v592
        %v594 = vpop.f32.mrb[0].mxu0
        %v595 = vpop.f32.mrb[0].mxu0
        %v596 = vadd.f32 %v292, %v595
        %v597 = vpop.f32.mrb[0].mxu0
        %598 = vmatprep.mubr.bf16.mxu0 0
        %599 = vmatmul.mubr.bf16.gmra.mrb[0].mxu0 %v426
        %v600 = vpop.f32.mrb[0].mxu0
        %v601 = vadd.f32 %v292, %v600
        %v602 = vpop.f32.mrb[0].mxu0
        %v603 = vpop.f32.mrb[0].mxu0
        %v604 = vadd.f32 %v292, %v603
        %v605 = vpop.f32.mrb[0].mxu0
        %606 = vmatprep.mubr.bf16.mxu0 0
        %607 = vmatmul.mubr.bf16.gmra.mrb[0].mxu0 %v427
        %v608 = vpop.f32.mrb[0].mxu0
        %v609 = vadd.f32 %v292, %v608
        %v610 = vpop.f32.mrb[0].mxu0
        %v611 = vpop.f32.mrb[0].mxu0
        %v612 = vadd.f32 %v292, %v611
        %v613 = vpop.f32.mrb[0].mxu0
        %614 = vmatprep.mubr.bf16.mxu0 0
        %615 = vmatmul.mubr.bf16.gmra.mrb[0].mxu0 %v428
        %v616 = vpop.f32.mrb[0].mxu0
        %v617 = vadd.f32 %v292, %v616
        %v618 = vpop.f32.mrb[0].mxu0
        %v619 = vpop.f32.mrb[0].mxu0
        %v620 = vadd.f32 %v292, %v619
        %v621 = vpop.f32.mrb[0].mxu0
        %622 = vmatprep.mubr.bf16.mxu0 0
        %623 = vmatmul.mubr.bf16.gmra.mrb[0].mxu0 %v429
        %v624 = vpop.f32.mrb[0].mxu0
        %v625 = vadd.f32 %v292, %v624
        %v626 = vpop.f32.mrb[0].mxu0
        %v627 = vpop.f32.mrb[0].mxu0
        %v628 = vadd.f32 %v292, %v627
        %v629 = vpop.f32.mrb[0].mxu0
        %630 = vmatprep.mubr.bf16.mxu0 0
        %631 = vmatmul.mubr.bf16.gmra.mrb[0].mxu0 %v430
        %v632 = vpop.f32.mrb[0].mxu0
        %v633 = vadd.f32 %v292, %v632
        %v634 = vpop.f32.mrb[0].mxu0
        %v635 = vpop.f32.mrb[0].mxu0
        %v636 = vadd.f32 %v292, %v635
        %v637 = vpop.f32.mrb[0].mxu0
        %638 = vmatprep.mubr.bf16.mxu0 0
        %639 = vmatmul.mubr.bf16.gmra.mrb[0].mxu0 %v431
        %v640 = vpop.f32.mrb[0].mxu0
        %v641 = vadd.f32 %v292, %v640
        %v642 = vpop.f32.mrb[0].mxu0
        %v643 = vpop.f32.mrb[0].mxu0
        %v644 = vadd.f32 %v292, %v643
        %v645 = vpop.f32.mrb[0].mxu0
        %646 = vmatprep.mubr.bf16.mxu0 0
        %647 = vmatmul.mubr.bf16.gmra.mrb[0].mxu0 %v432
        %v648 = vpop.f32.mrb[0].mxu0
        %v649 = vadd.f32 %v292, %v648
        %v650 = vpop.f32.mrb[0].mxu0
        %v651 = vpop.f32.mrb[0].mxu0
        %v652 = vadd.f32 %v292, %v651
        %v653 = vpop.f32.mrb[0].mxu0
        %654 = vmatprep.mubr.bf16.mxu0 0
        %655 = vmatmul.mubr.bf16.gmra.mrb[0].mxu0 %v433
        %v656 = vpop.f32.mrb[0].mxu0
        %v657 = vadd.f32 %v292, %v656
        %v658 = vpop.f32.mrb[0].mxu0
        %v659 = vpop.f32.mrb[0].mxu0
        %v660 = vadd.f32 %v292, %v659
        %v661 = vpop.f32.mrb[0].mxu0
        %662 = vmatprep.mubr.bf16.mxu0 0
        %663 = vmatmul.mubr.bf16.gmra.mrb[0].mxu0 %v434
        %v664 = vpop.f32.mrb[0].mxu0
        %v665 = vadd.f32 %v292, %v664
        %v666 = vpop.f32.mrb[0].mxu0
        %v667 = vpop.f32.mrb[0].mxu0
        %v668 = vadd.f32 %v292, %v667
        %v669 = vpop.f32.mrb[0].mxu0
        %670 = vmatprep.mubr.bf16.mxu0 0
        %671 = vmatmul.mubr.bf16.gmra.mrb[0].mxu0 %v435
        %v672 = vpop.f32.mrb[0].mxu0
        %v673 = vadd.f32 %v292, %v672
        %v674 = vpop.f32.mrb[0].mxu0
        %v675 = vpop.f32.mrb[0].mxu0
        %v676 = vadd.f32 %v292, %v675
        %v677 = vpop.f32.mrb[0].mxu0
        %678 = vmatprep.mubr.bf16.mxu0 0
        %679 = vmatmul.mubr.bf16.gmra.mrb[0].mxu0 %v436
        %v680 = vpop.f32.mrb[0].mxu0
        %v681 = vadd.f32 %v292, %v680
        %v682 = vpop.f32.mrb[0].mxu0
        %v683 = vpop.f32.mrb[0].mxu0
        %v684 = vadd.f32 %v292, %v683
        %v685 = vpop.f32.mrb[0].mxu0
        %686 = vmatprep.mubr.bf16.mxu0 0
        %687 = vmatmul.mubr.bf16.gmra.mrb[0].mxu0 %v437
        %v688 = vpop.f32.mrb[0].mxu0
        %v689 = vadd.f32 %v292, %v688
        %v690 = vpop.f32.mrb[0].mxu0
        %v691 = vpop.f32.mrb[0].mxu0
        %v692 = vadd.f32 %v292, %v691
        %v693 = vpop.f32.mrb[0].mxu0
        %694 = vmatprep.mubr.bf16.mxu0 0
        %695 = vmatmul.mubr.bf16.gmra.mrb[0].mxu0 %v438
        %v696 = vpop.f32.mrb[0].mxu0
        %v697 = vadd.f32 %v292, %v696
        %v698 = vpop.f32.mrb[0].mxu0
        %v699 = vpop.f32.mrb[0].mxu0
        %v700 = vadd.f32 %v292, %v699
        %v701 = vpop.f32.mrb[0].mxu0
        %702 = vmatprep.mubr.bf16.mxu0 0
        %703 = vmatmul.mubr.bf16.gmra.mrb[0].mxu0 %v439
        %v704 = vpop.f32.mrb[0].mxu0
        %v705 = vadd.f32 %v292, %v704
        %v706 = vpop.f32.mrb[0].mxu0
        %v707 = vpop.f32.mrb[0].mxu0
        %v708 = vadd.f32 %v292, %v707
        %v709 = vpop.f32.mrb[0].mxu0
        %710 = vmatprep.mubr.bf16.mxu0 0
        %711 = vmatmul.mubr.bf16.gmra.mrb[0].mxu0 %v440
        %v712 = vpop.f32.mrb[0].mxu0
        %v713 = vadd.f32 %v292, %v712
        %v714 = vpop.f32.mrb[0].mxu0
        %v715 = vpop.f32.mrb[0].mxu0
        %v716 = vadd.f32 %v292, %v715
        %v717 = vpop.f32.mrb[0].mxu0
        %718 = vmatprep.mubr.bf16.mxu0 0
        %719 = vmatmul.mubr.bf16.gmra.mrb[0].mxu0 %v441
        %v720 = vpop.f32.mrb[0].mxu0
        %v721 = vadd.f32 %v292, %v720
        %v722 = vpop.f32.mrb[0].mxu0
        %v723 = vpop.f32.mrb[0].mxu0
        %v724 = vadd.f32 %v292, %v723
        %v725 = vpop.f32.mrb[0].mxu0
        %726 = vmatprep.mubr.bf16.mxu0 0
        %727 = vmatmul.mubr.bf16.gmra.mrb[0].mxu0 %v442
        %v728 = vpop.f32.mrb[0].mxu0
        %v729 = vadd.f32 %v292, %v728
        %v730 = vpop.f32.mrb[0].mxu0
        %v731 = vpop.f32.mrb[0].mxu0
        %v732 = vadd.f32 %v292, %v731
        %v733 = vpop.f32.mrb[0].mxu0
        %734 = vmatprep.mubr.bf16.mxu0 0
        %735 = vmatmul.mubr.bf16.gmra.mrb[0].mxu0 %v443
        %v736 = vpop.f32.mrb[0].mxu0
        %v737 = vadd.f32 %v292, %v736
        %v738 = vpop.f32.mrb[0].mxu0
        %v739 = vpop.f32.mrb[0].mxu0
        %v740 = vadd.f32 %v292, %v739
        %v741 = vpop.f32.mrb[0].mxu0
        %742 = vmatprep.mubr.bf16.mxu0 0
        %743 = vmatmul.mubr.bf16.gmra.mrb[0].mxu0 %v444
        %v744 = vpop.f32.mrb[0].mxu0
        %v745 = vadd.f32 %v292, %v744
        %v746 = vpop.f32.mrb[0].mxu0
        %v747 = vpop.f32.mrb[0].mxu0
        %v748 = vadd.f32 %v292, %v747
        %v749 = vpop.f32.mrb[0].mxu0
        %750 = vmatprep.mubr.bf16.mxu0 0
        %751 = vmatmul.mubr.bf16.gmra.mrb[0].mxu0 %v445
        %v752 = vpop.f32.mrb[0].mxu0
        %v753 = vadd.f32 %v292, %v752
        %v754 = vpop.f32.mrb[0].mxu0
        %v755 = vpop.f32.mrb[0].mxu0
        %v756 = vadd.f32 %v292, %v755
        %v757 = vpop.f32.mrb[0].mxu0
        %758 = vmatprep.mubr.bf16.mxu0 0
        %759 = vmatmul.mubr.bf16.gmra.mrb[0].mxu0 %v446
        %v760 = vpop.f32.mrb[0].mxu0
        %v761 = vadd.f32 %v292, %v760
        %v762 = vpop.f32.mrb[0].mxu0
        %v763 = vpop.f32.mrb[0].mxu0
        %v764 = vadd.f32 %v292, %v763
        %v765 = vpop.f32.mrb[0].mxu0
        %766 = vmatprep.mubr.bf16.mxu0 0
        %767 = vmatmul.mubr.bf16.gmra.mrb[0].mxu0 %v447
        %v768 = vpop.f32.mrb[0].mxu0
        %v769 = vadd.f32 %v292, %v768
        %v770 = vpop.f32.mrb[0].mxu0
        %v771 = vpop.f32.mrb[0].mxu0
        %v772 = vadd.f32 %v292, %v771
        %v773 = vpop.f32.mrb[0].mxu0
        %774 = vmatprep.mubr.bf16.mxu0 0
        %775 = vmatmul.mubr.bf16.gmra.mrb[0].mxu0 %v448
        %v776 = vpop.f32.mrb[0].mxu0
        %v777 = vadd.f32 %v292, %v776
        %v778 = vpop.f32.mrb[0].mxu0
        %v779 = vpop.f32.mrb[0].mxu0
        %v780 = vadd.f32 %v292, %v779
        %v781 = vpop.f32.mrb[0].mxu0
        %782 = vmatprep.mubr.bf16.mxu0 0
        %783 = vmatmul.mubr.bf16.gmra.mrb[0].mxu0 %v449
        %v784 = vpop.f32.mrb[0].mxu0
        %v785 = vadd.f32 %v292, %v784
        %v786 = vpop.f32.mrb[0].mxu0
        %v787 = vpop.f32.mrb[0].mxu0
        %v788 = vadd.f32 %v292, %v787
        %v789 = vpop.f32.mrb[0].mxu0
        %790 = vmatprep.mubr.bf16.mxu0 0
        %791 = vmatmul.mubr.bf16.gmra.mrb[0].mxu0 %v450
        %v792 = vpop.f32.mrb[0].mxu0
        %v793 = vadd.f32 %v292, %v792
        %v794 = vpop.f32.mrb[0].mxu0
        %v795 = vpop.f32.mrb[0].mxu0
        %v796 = vadd.f32 %v292, %v795
        %v797 = vpop.f32.mrb[0].mxu0
        %798 = vmatprep.mubr.bf16.mxu0 0
        %799 = vmatmul.mubr.bf16.gmra.mrb[0].mxu0 %v451
        %v800 = vpop.f32.mrb[0].mxu0
        %v801 = vadd.f32 %v292, %v800
        %v802 = vpop.f32.mrb[0].mxu0
        %v803 = vpop.f32.mrb[0].mxu0
        %v804 = vadd.f32 %v292, %v803
        %v805 = vpop.f32.mrb[0].mxu0
        %806 = vmatprep.mubr.bf16.mxu0 0
        %807 = vmatmul.mubr.bf16.gmra.mrb[0].mxu0 %v452
        %v808 = vpop.f32.mrb[0].mxu0
        %v809 = vadd.f32 %v292, %v808
        %v810 = vpop.f32.mrb[0].mxu0
        %v811 = vpop.f32.mrb[0].mxu0
        %v812 = vadd.f32 %v292, %v811
        %v813 = vpop.f32.mrb[0].mxu0
        %814 = vmatprep.mubr.bf16.mxu0 0
        %815 = vmatmul.mubr.bf16.gmra.mrb[0].mxu0 %v453
        %v816 = vpop.f32.mrb[0].mxu0
        %v817 = vadd.f32 %v292, %v816
        %v818 = vpop.f32.mrb[0].mxu0
        %v819 = vpop.f32.mrb[0].mxu0
        %v820 = vadd.f32 %v292, %v819
        %v821 = vpop.f32.mrb[0].mxu0
        %822 = vdwg.mxu0
        %v823 = vmax.f32 %v569, 0.0
        %v824 = vmax.f32 %v572, 0.0
        %v825 = vmax.f32 %v577, 0.0
        %v826 = vmax.f32 %v580, 0.0
        %v827 = vmax.f32 %v585, 0.0
        %v828 = vmax.f32 %v588, 0.0
        %v829 = vmax.f32 %v593, 0.0
        %v830 = vmax.f32 %v596, 0.0
        %v831 = vmax.f32 %v601, 0.0
        %v832 = vmax.f32 %v604, 0.0
        %v833 = vmax.f32 %v609, 0.0
        %v834 = vmax.f32 %v612, 0.0
        %v835 = vmax.f32 %v617, 0.0
        %v836 = vmax.f32 %v620, 0.0
        %v837 = vmax.f32 %v625, 0.0
        %v838 = vmax.f32 %v628, 0.0
        %v839 = vmax.f32 %v633, 0.0
        %v840 = vmax.f32 %v636, 0.0
        %v841 = vmax.f32 %v641, 0.0
        %v842 = vmax.f32 %v644, 0.0
        %v843 = vmax.f32 %v649, 0.0
        %v844 = vmax.f32 %v652, 0.0
        %v845 = vmax.f32 %v657, 0.0
        %v846 = vmax.f32 %v660, 0.0
        %v847 = vmax.f32 %v665, 0.0
        %v848 = vmax.f32 %v668, 0.0
        %v849 = vmax.f32 %v673, 0.0
        %v850 = vmax.f32 %v676, 0.0
        %v851 = vmax.f32 %v681, 0.0
        %v852 = vmax.f32 %v684, 0.0
        %v853 = vmax.f32 %v689, 0.0
        %v854 = vmax.f32 %v692, 0.0
        %v855 = vmax.f32 %v697, 0.0
        %v856 = vmax.f32 %v700, 0.0
        %v857 = vmax.f32 %v705, 0.0
        %v858 = vmax.f32 %v708, 0.0
        %v859 = vmax.f32 %v713, 0.0
        %v860 = vmax.f32 %v716, 0.0
        %v861 = vmax.f32 %v721, 0.0
        %v862 = vmax.f32 %v724, 0.0
        %v863 = vmax.f32 %v729, 0.0
        %v864 = vmax.f32 %v732, 0.0
        %v865 = vmax.f32 %v737, 0.0
        %v866 = vmax.f32 %v740, 0.0
        %v867 = vmax.f32 %v745, 0.0
        %v868 = vmax.f32 %v748, 0.0
        %v869 = vmax.f32 %v753, 0.0
        %v870 = vmax.f32 %v756, 0.0
        %v871 = vmax.f32 %v761, 0.0
        %v872 = vmax.f32 %v764, 0.0
        %v873 = vmax.f32 %v769, 0.0
        %v874 = vmax.f32 %v772, 0.0
        %v875 = vmax.f32 %v777, 0.0
        %v876 = vmax.f32 %v780, 0.0
        %v877 = vmax.f32 %v785, 0.0
        %v878 = vmax.f32 %v788, 0.0
        %v879 = vmax.f32 %v793, 0.0
        %v880 = vmax.f32 %v796, 0.0
        %v881 = vmax.f32 %v801, 0.0
        %v882 = vmax.f32 %v804, 0.0
        %v883 = vmax.f32 %v809, 0.0
        %v884 = vmax.f32 %v812, 0.0
        %v885 = vmax.f32 %v817, 0.0
        %v886 = vmax.f32 %v820, 0.0
        %v887 = vpack.c.bf16 %v824, %v823
        %v888 = vpack.c.bf16 %v826, %v825
        %v889 = vpack.c.bf16 %v828, %v827
        %v890 = vpack.c.bf16 %v830, %v829
        %v891 = vpack.c.bf16 %v832, %v831
        %v892 = vpack.c.bf16 %v834, %v833
        %v893 = vpack.c.bf16 %v836, %v835
        %v894 = vpack.c.bf16 %v838, %v837
        %v895 = vpack.c.bf16 %v840, %v839
        %v896 = vpack.c.bf16 %v842, %v841
        %v897 = vpack.c.bf16 %v844, %v843
        %v898 = vpack.c.bf16 %v846, %v845
        %v899 = vpack.c.bf16 %v848, %v847
        %v900 = vpack.c.bf16 %v850, %v849
        %v901 = vpack.c.bf16 %v852, %v851
        %v902 = vpack.c.bf16 %v854, %v853
        %v903 = vpack.c.bf16 %v856, %v855
        %v904 = vpack.c.bf16 %v858, %v857
        %v905 = vpack.c.bf16 %v860, %v859
        %v906 = vpack.c.bf16 %v862, %v861
        %v907 = vpack.c.bf16 %v864, %v863
        %v908 = vpack.c.bf16 %v866, %v865
        %v909 = vpack.c.bf16 %v868, %v867
        %v910 = vpack.c.bf16 %v870, %v869
        %v911 = vpack.c.bf16 %v872, %v871
        %v912 = vpack.c.bf16 %v874, %v873
        %v913 = vpack.c.bf16 %v876, %v875
        %v914 = vpack.c.bf16 %v878, %v877
        %v915 = vpack.c.bf16 %v880, %v879
        %v916 = vpack.c.bf16 %v882, %v881
        %v917 = vpack.c.bf16 %v884, %v883
        %v918 = vpack.c.bf16 %v886, %v885
        %v951 = vunpack.c.l.b16 %v887
        %v952 = vunpack.c.h.b16 %v887
        %v953 = vunpack.c.l.b16 %v888
        %v954 = vunpack.c.h.b16 %v888
        %v955 = vunpack.c.l.b16 %v889
        %v956 = vunpack.c.h.b16 %v889
        %v957 = vunpack.c.l.b16 %v890
        %v958 = vunpack.c.h.b16 %v890
        %v959 = vunpack.c.l.b16 %v891
        %v960 = vunpack.c.h.b16 %v891
        %v961 = vunpack.c.l.b16 %v892
        %v962 = vunpack.c.h.b16 %v892
        %v963 = vunpack.c.l.b16 %v893
        %v964 = vunpack.c.h.b16 %v893
        %v965 = vunpack.c.l.b16 %v894
        %v966 = vunpack.c.h.b16 %v894
        %v967 = vunpack.c.l.b16 %v895
        %v968 = vunpack.c.h.b16 %v895
        %v969 = vunpack.c.l.b16 %v896
        %v970 = vunpack.c.h.b16 %v896
        %v971 = vunpack.c.l.b16 %v897
        %v972 = vunpack.c.h.b16 %v897
        %v973 = vunpack.c.l.b16 %v898
        %v974 = vunpack.c.h.b16 %v898
        %v975 = vunpack.c.l.b16 %v899
        %v976 = vunpack.c.h.b16 %v899
        %v977 = vunpack.c.l.b16 %v900
        %v978 = vunpack.c.h.b16 %v900
        %v979 = vunpack.c.l.b16 %v901
        %v980 = vunpack.c.h.b16 %v901
        %v981 = vunpack.c.l.b16 %v902
        %v982 = vunpack.c.h.b16 %v902
        %v983 = vunpack.c.l.b16 %v903
        %v984 = vunpack.c.h.b16 %v903
        %v985 = vunpack.c.l.b16 %v904
        %v986 = vunpack.c.h.b16 %v904
        %v987 = vunpack.c.l.b16 %v905
        %v988 = vunpack.c.h.b16 %v905
        %v989 = vunpack.c.l.b16 %v906
        %v990 = vunpack.c.h.b16 %v906
        %v991 = vunpack.c.l.b16 %v907
        %v992 = vunpack.c.h.b16 %v907
        %v993 = vunpack.c.l.b16 %v908
        %v994 = vunpack.c.h.b16 %v908
        %v995 = vunpack.c.l.b16 %v909
        %v996 = vunpack.c.h.b16 %v909
        %v997 = vunpack.c.l.b16 %v910
        %v998 = vunpack.c.h.b16 %v910
        %v999 = vunpack.c.l.b16 %v911
        %v1000 = vunpack.c.h.b16 %v911
        %v1001 = vunpack.c.l.b16 %v912
        %v1002 = vunpack.c.h.b16 %v912
        %v1003 = vunpack.c.l.b16 %v913
        %v1004 = vunpack.c.h.b16 %v913
        %v1005 = vunpack.c.l.b16 %v914
        %v1006 = vunpack.c.h.b16 %v914
        %v1007 = vunpack.c.l.b16 %v915
        %v1008 = vunpack.c.h.b16 %v915
        %v1009 = vunpack.c.l.b16 %v916
        %v1010 = vunpack.c.h.b16 %v916
        %v1011 = vunpack.c.l.b16 %v917
        %v1012 = vunpack.c.h.b16 %v917
        %v1013 = vunpack.c.l.b16 %v918
        %v1014 = vunpack.c.h.b16 %v918
        %v1015 = vpack.c.b16 %v951, %v951
        %v1016 = vpack.c.b16 %v952, %v952
        %v1017 = vpack.c.b16 %v953, %v953
        %v1018 = vpack.c.b16 %v954, %v954
        %v1019 = vpack.c.b16 %v955, %v955
        %v1020 = vpack.c.b16 %v956, %v956
        %v1021 = vpack.c.b16 %v957, %v957
        %v1022 = vpack.c.b16 %v958, %v958
        %v1023 = vpack.c.b16 %v959, %v959
        %v1024 = vpack.c.b16 %v960, %v960
        %v1025 = vpack.c.b16 %v961, %v961
        %v1026 = vpack.c.b16 %v962, %v962
        %v1027 = vpack.c.b16 %v963, %v963
        %v1028 = vpack.c.b16 %v964, %v964
        %v1029 = vpack.c.b16 %v965, %v965
        %v1030 = vpack.c.b16 %v966, %v966
        %v1031 = vpack.c.b16 %v967, %v967
        %v1032 = vpack.c.b16 %v968, %v968
        %v1033 = vpack.c.b16 %v969, %v969
        %v1034 = vpack.c.b16 %v970, %v970
        %v1035 = vpack.c.b16 %v971, %v971
        %v1036 = vpack.c.b16 %v972, %v972
        %v1037 = vpack.c.b16 %v973, %v973
        %v1038 = vpack.c.b16 %v974, %v974
        %v1039 = vpack.c.b16 %v975, %v975
        %v1040 = vpack.c.b16 %v976, %v976
        %v1041 = vpack.c.b16 %v977, %v977
        %v1042 = vpack.c.b16 %v978, %v978
        %v1043 = vpack.c.b16 %v979, %v979
        %v1044 = vpack.c.b16 %v980, %v980
        %v1045 = vpack.c.b16 %v981, %v981
        %v1046 = vpack.c.b16 %v982, %v982
        %v1047 = vpack.c.b16 %v983, %v983
        %v1048 = vpack.c.b16 %v984, %v984
        %v1049 = vpack.c.b16 %v985, %v985
        %v1050 = vpack.c.b16 %v986, %v986
        %v1051 = vpack.c.b16 %v987, %v987
        %v1052 = vpack.c.b16 %v988, %v988
        %v1053 = vpack.c.b16 %v989, %v989
        %v1054 = vpack.c.b16 %v990, %v990
        %v1055 = vpack.c.b16 %v991, %v991
        %v1056 = vpack.c.b16 %v992, %v992
        %v1057 = vpack.c.b16 %v993, %v993
        %v1058 = vpack.c.b16 %v994, %v994
        %v1059 = vpack.c.b16 %v995, %v995
        %v1060 = vpack.c.b16 %v996, %v996
        %v1061 = vpack.c.b16 %v997, %v997
        %v1062 = vpack.c.b16 %v998, %v998
        %v1063 = vpack.c.b16 %v999, %v999
        %v1064 = vpack.c.b16 %v1000, %v1000
        %v1065 = vpack.c.b16 %v1001, %v1001
        %v1066 = vpack.c.b16 %v1002, %v1002
        %v1067 = vpack.c.b16 %v1003, %v1003
        %v1068 = vpack.c.b16 %v1004, %v1004
        %v1069 = vpack.c.b16 %v1005, %v1005
        %v1070 = vpack.c.b16 %v1006, %v1006
        %v1071 = vpack.c.b16 %v1007, %v1007
        %v1072 = vpack.c.b16 %v1008, %v1008
        %v1073 = vpack.c.b16 %v1009, %v1009
        %v1074 = vpack.c.b16 %v1010, %v1010
        %v1075 = vpack.c.b16 %v1011, %v1011
        %v1076 = vpack.c.b16 %v1012, %v1012
        %v1077 = vpack.c.b16 %v1013, %v1013
        %v1078 = vpack.c.b16 %v1014, %v1014
        %1143 = vst [vmem:[%s203] sm:$0xf] %v1015
        %1144 = vst [vmem:[%s203 + $0x4] sm:$0xf] %v1016
        %1145 = vst [vmem:[%s203 + $0x8] sm:$0xf] %v1017
        %1146 = vst [vmem:[%s203 + $0xc] sm:$0xf] %v1018
        %1147 = vst [vmem:[%s203 + $0x10] sm:$0xf] %v1019
        %1148 = vst [vmem:[%s203 + $0x14] sm:$0xf] %v1020
        %1149 = vst [vmem:[%s203 + $0x18] sm:$0xf] %v1021
        %1150 = vst [vmem:[%s203 + $0x1c] sm:$0xf] %v1022
        %1151 = vst [vmem:[%s203 + $0x20] sm:$0xf] %v1023
        %1152 = vst [vmem:[%s203 + $0x24] sm:$0xf] %v1024
        %1153 = vst [vmem:[%s203 + $0x28] sm:$0xf] %v1025
        %1154 = vst [vmem:[%s203 + $0x2c] sm:$0xf] %v1026
        %1155 = vst [vmem:[%s203 + $0x30] sm:$0xf] %v1027
        %1156 = vst [vmem:[%s203 + $0x34] sm:$0xf] %v1028
        %1157 = vst [vmem:[%s203 + $0x38] sm:$0xf] %v1029
        %1158 = vst [vmem:[%s203 + $0x3c] sm:$0xf] %v1030
        %1159 = vst [vmem:[%s203 + $0x40] sm:$0xf] %v1031
        %1160 = vst [vmem:[%s203 + $0x44] sm:$0xf] %v1032
        %1161 = vst [vmem:[%s203 + $0x48] sm:$0xf] %v1033
        %1162 = vst [vmem:[%s203 + $0x4c] sm:$0xf] %v1034
        %1163 = vst [vmem:[%s203 + $0x50] sm:$0xf] %v1035
        %1164 = vst [vmem:[%s203 + $0x54] sm:$0xf] %v1036
        %1165 = vst [vmem:[%s203 + $0x58] sm:$0xf] %v1037
        %1166 = vst [vmem:[%s203 + $0x5c] sm:$0xf] %v1038
        %1167 = vst [vmem:[%s203 + $0x60] sm:$0xf] %v1039
        %1168 = vst [vmem:[%s203 + $0x64] sm:$0xf] %v1040
        %1169 = vst [vmem:[%s203 + $0x68] sm:$0xf] %v1041
        %1170 = vst [vmem:[%s203 + $0x6c] sm:$0xf] %v1042
        %1171 = vst [vmem:[%s203 + $0x70] sm:$0xf] %v1043
        %1172 = vst [vmem:[%s203 + $0x74] sm:$0xf] %v1044
        %1173 = vst [vmem:[%s203 + $0x78] sm:$0xf] %v1045
        %1174 = vst [vmem:[%s203 + $0x7c] sm:$0xf] %v1046
        %1175 = vst [vmem:[%s203 + $0x80] sm:$0xf] %v1047
        %1176 = vst [vmem:[%s203 + $0x84] sm:$0xf] %v1048
        %1177 = vst [vmem:[%s203 + $0x88] sm:$0xf] %v1049
        %1178 = vst [vmem:[%s203 + $0x8c] sm:$0xf] %v1050
        %1179 = vst [vmem:[%s203 + $0x90] sm:$0xf] %v1051
        %1180 = vst [vmem:[%s203 + $0x94] sm:$0xf] %v1052
        %1181 = vst [vmem:[%s203 + $0x98] sm:$0xf] %v1053
        %1182 = vst [vmem:[%s203 + $0x9c] sm:$0xf] %v1054
        %1183 = vst [vmem:[%s203 + $0xa0] sm:$0xf] %v1055
        %1184 = vst [vmem:[%s203 + $0xa4] sm:$0xf] %v1056
        %1185 = vst [vmem:[%s203 + $0xa8] sm:$0xf] %v1057
        %1186 = vst [vmem:[%s203 + $0xac] sm:$0xf] %v1058
        %1187 = vst [vmem:[%s203 + $0xb0] sm:$0xf] %v1059
        %1188 = vst [vmem:[%s203 + $0xb4] sm:$0xf] %v1060
        %1189 = vst [vmem:[%s203 + $0xb8] sm:$0xf] %v1061
        %1190 = vst [vmem:[%s203 + $0xbc] sm:$0xf] %v1062
        %1191 = vst [vmem:[%s203 + $0xc0] sm:$0xf] %v1063
        %1192 = vst [vmem:[%s203 + $0xc4] sm:$0xf] %v1064
        %1193 = vst [vmem:[%s203 + $0xc8] sm:$0xf] %v1065
        %1194 = vst [vmem:[%s203 + $0xcc] sm:$0xf] %v1066
        %1195 = vst [vmem:[%s203 + $0xd0] sm:$0xf] %v1067
        %1196 = vst [vmem:[%s203 + $0xd4] sm:$0xf] %v1068
        %1197 = vst [vmem:[%s203 + $0xd8] sm:$0xf] %v1069
        %1198 = vst [vmem:[%s203 + $0xdc] sm:$0xf] %v1070
        %1199 = vst [vmem:[%s203 + $0xe0] sm:$0xf] %v1071
        %1200 = vst [vmem:[%s203 + $0xe4] sm:$0xf] %v1072
        %1201 = vst [vmem:[%s203 + $0xe8] sm:$0xf] %v1073
        %1202 = vst [vmem:[%s203 + $0xec] sm:$0xf] %v1074
        %1203 = vst [vmem:[%s203 + $0xf0] sm:$0xf] %v1075
        %1204 = vst [vmem:[%s203 + $0xf4] sm:$0xf] %v1076
        %1205 = vst [vmem:[%s203 + $0xf8] sm:$0xf] %v1077
        %1206 = vst [vmem:[%s203 + $0xfc] sm:$0xf] %v1078
        %s1207 = sand.u32 %s97, 1
        %s1208 = scalar_lea.sflag [#allocation4], %s1207
        %s1209 = sand.u32 %s97, 1
        %s1210 = smul.addr %s1209, 256
        %s1211 = scalar_lea.vmem [#allocation7], %s1210
        // Predicated region
        $region41: #{tpu_custom_call.1} parent=31 // pred_check
          %p1212 = pneg %p107
        $region42: #{tpu_custom_call.1} parent=31 // pred_check_branch
          %1214 = sbr.rel (%p1212) target = $region44
        $region43: #{tpu_custom_call.1} parent=31 // pred_region
          %s1215 = smul.u32 64, %s21
          %s1217 = ssub.s32 4096, 4096
          %1218 = vsyncadd %s1208, %s1217
          %s1219 = smul.addr %s1215, 64
          %s1220 = scalar_lea.hbm %s3, %s1219
          %s1221 = sshll.u32 %s1211, 4
          %s1222 = int_to_ptr.vmem [resolvable:$true] %s1221
          %1227 = dma.vmem_to_hbm [thread:$0]  %s1222, 4096, %s1220, %s1208, 64, 64, 4
        $region44: #{tpu_custom_call.1} parent=31 // pred_fallthru
          _
      $region32: #{tpu_custom_call.1} parent=5 // pred_fallthru
        _
      %p1228 = scmp.le.s32.totalorder 2, %s16
      // Predicated region
      $region45: #{tpu_custom_call.1} parent=5 // pred_check
        %p1229 = pneg %p1228
      $region46: #{tpu_custom_call.1} parent=5 // pred_check_branch
        %1231 = sbr.rel (%p1229) target = $region48
      $region47: #{tpu_custom_call.1} parent=5 // pred_region
        %s1232 = ssub.s32 %s16, 2
        // Predicated region
        $region49: #{tpu_custom_call.1} parent=47 // pred_check
          %p1233 = pneg %p113
        $region50: #{tpu_custom_call.1} parent=47 // pred_check_branch
          %1235 = sbr.rel (%p1233) target = $region52
        $region51: #{tpu_custom_call.1} parent=47 // pred_region
          %s1236 = sand.u32 %s98, 1
          %s1237 = scalar_lea.sflag [#allocation4], %s1236
          %s1238 = sand.u32 %s98, 1
          %s1239 = smul.addr %s1238, 256
          %s1240 = scalar_lea.vmem [#allocation7], %s1239
          %1241 = dma.done %s1237, 4096
        $region52: #{tpu_custom_call.1} parent=47 // pred_fallthru
          _
      $region48: #{tpu_custom_call.1} parent=5 // pred_fallthru
        _
    $region6: #{tpu_custom_call.1} parent=1 // loop_footer
      %s20 = sadd.s32 1, %s16
    $region7: #{tpu_custom_call.1} parent=1 // loop_footer_branch
      %15 = sbr.rel target = $region3
    $region8: #{tpu_custom_call.1} parent=1 // loop_exit
      _
    %1242 = vsyncpa [#allocation3], 1
    %s1243 = scalar_lea.sflag [#allocation3], 1
    %1244 = vsyncpa %s1243, 1
    %1245 = vsyncpa [#allocation6], 1
    %1246 = vsyncpa [#allocation4], 1
    %s1247 = scalar_lea.sflag [#allocation4], 1
    %1248 = vsyncpa %s1247, 1

</llo_original>
